<compile_context>
chip_gen: v6e
topology: v6e:2x2x1
jax: 0.10.0
libtpu: 0.0.40
codegen_flags: <defaults>
</compile_context>

<pallas_src>
import functools
import math

import jax
import jax.numpy as jnp
from jax import lax
from jax.experimental import pallas as pl
from jax.experimental.pallas import tpu as pltpu


def _round_up(x, m):
    return ((x + m - 1) // m) * m


def _cdiv(a, b):
    return (a + b - 1) // b


def _linear_embed_kernel(x_ref, w_ref, p_ref, o_ref, *, use_norm):
    # x_ref: (tm, K) bf16 stream, w_ref: (K, N) bf16 resident,
    # p_ref: (3, N) f32 resident = [bias; gamma; beta], o_ref: (tm, N) f32.
    x = x_ref[...]
    w = w_ref[...]

    # Linear: x @ W^T + b, f32 accumulation on the MXU.
    y = jnp.dot(x, w, preferred_element_type=jnp.float32) + p_ref[0:1, :]

    # Exact GELU (erf), matching nn.GELU() default.  (tanh-approx would move
    # work to the EUP but changes semantics; kept exact for parity.)
    y = 0.5 * y * (1.0 + lax.erf(y * jnp.float32(0.7071067811865476)))

    if use_norm:
        # N is the true output_dim (no padding) -> plain, unmasked statistics.
        mean = jnp.mean(y, axis=-1, keepdims=True)
        centered = y - mean
        var = jnp.mean(centered * centered, axis=-1, keepdims=True)
        y = centered * lax.rsqrt(var + jnp.float32(1e-5)) * p_ref[1:2, :] \
            + p_ref[2:3, :]

    o_ref[...] = y.astype(o_ref.dtype)


def _choose_tm(M, K, N, x_itemsize, budget_bytes):
    """Largest row tile (multiple of 8, <=512) whose pipelined VMEM footprint
    fits the budget; also capped so the grid has >= 2 steps (megacore)."""

    def footprint(tm):
        return (
            2 * tm * K * x_itemsize   # double-buffered X stream (bf16)
            + 2 * tm * N * 4          # double-buffered f32 output stream
            + 2 * tm * N * 4          # f32 epilogue intermediates headroom
            + 1 * K * N * x_itemsize  # resident W (single-buffered)
            + 3 * N * 4               # resident bias/gamma/beta
        )

    tm = min(512, _round_up(M, 8))
    if M > 8:
        # Keep at least 2 grid steps so both v7x TensorCores receive work.
        tm = min(tm, _round_up(_cdiv(M, 2), 8))
    tm = max(8, (tm // 8) * 8)
    while tm > 8 and footprint(tm) > budget_bytes:
        tm = max(8, ((tm // 2) // 8) * 8)  # re-round to a multiple of 8
    return tm, footprint(tm)


def _linear_embed_pallas(x2d, w2d, params, *, use_norm):
    M, K = x2d.shape
    N = w2d.shape[1]
    x_itemsize = jnp.dtype(x2d.dtype).itemsize

    # Budget tiles against 40 MiB and set the scoped-VMEM limit explicitly:
    # always above v5e's 16 MiB default, never above ~60 MiB (< v7x's
    # 64 MiB physical per TensorCore).
    tile_budget = 40 * 1024 * 1024
    tm, footprint = _choose_tm(M, K, N, x_itemsize, tile_budget)
    vmem_limit = int(min(60 * 1024 * 1024,
                         max(32 * 1024 * 1024, 2 * footprint)))

    grid = (_cdiv(M, tm),)
    kernel = functools.partial(_linear_embed_kernel, use_norm=use_norm)

    return pl.pallas_call(
        kernel,
        out_shape=jax.ShapeDtypeStruct((M, N), jnp.float32),
        grid_spec=pltpu.PrefetchScalarGridSpec(
            num_scalar_prefetch=0,
            grid=grid,
            in_specs=[
                # Streaming activations: true K as the full block dim.
                pl.BlockSpec((tm, K), lambda i: (i, 0)),
                # Resident weights / params: constant index map, single buffer.
                pl.BlockSpec((K, N), lambda i: (0, 0),
                             pipeline_mode=pl.Buffered(1)),
                pl.BlockSpec((3, N), lambda i: (0, 0),
                             pipeline_mode=pl.Buffered(1)),
            ],
            out_specs=pl.BlockSpec((tm, N), lambda i: (i, 0)),
        ),
        compiler_params=pltpu.CompilerParams(
            dimension_semantics=("parallel",),
            vmem_limit_bytes=vmem_limit,
        ),
    )(x2d, w2d, params)


@functools.partial(jax.jit, static_argnames=("use_norm", "compute_dtype"))
def linear_embedding(x, weight, bias, ln_gamma, ln_beta, *,
                     use_norm=True, compute_dtype=jnp.bfloat16):
    """Forward pass of LinearEmbedding.

    x:        (..., input_dim)  float32
    weight:   (output_dim, input_dim)   -- nn.Linear layout
    bias:     (output_dim,)
    ln_gamma, ln_beta: (output_dim,)    -- only used when use_norm=True
    returns:  (..., output_dim) float32
    """
    K = x.shape[-1]
    N = weight.shape[0]
    lead = x.shape[:-1]
    M = math.prod(lead) if lead else 1

    # Streamed operands in compute_dtype (bf16 by default: MXU-native, halves
    # HBM/VMEM traffic); parameters stay f32 for the f32 epilogue.
    x2d = x.reshape(M, K).astype(compute_dtype)
    w2d = weight.T.astype(compute_dtype)                      # (K, N)
    params = jnp.stack([bias, ln_gamma, ln_beta], axis=0).astype(jnp.float32)

    out2d = _linear_embed_pallas(x2d, w2d, params, use_norm=use_norm)
    return out2d.reshape(lead + (N,))


def _reference(x, weight, bias, ln_gamma, ln_beta, use_norm):
    y = jnp.einsum("...k,nk->...n", x, weight) + bias
    y = jax.nn.gelu(y, approximate=False)
    if use_norm:
        mean = jnp.mean(y, axis=-1, keepdims=True)
        var = jnp.mean((y - mean) ** 2, axis=-1, keepdims=True)
        y = (y - mean) * lax.rsqrt(var + 1e-5) * ln_gamma + ln_beta
    return y


if __name__ == "__main__":
    # Small shapes consistent with the module: batch=2, seq=8, 16 -> 32.
    B, S, input_dim, output_dim = 2, 8, 16, 32

    key = jax.random.PRNGKey(0)
    k_x, k_w, k_b = jax.random.split(key, 3)

    x = jax.random.normal(k_x, (B, S, input_dim), dtype=jnp.float32)

    # nn.Linear-like uniform init.
    bound = 1.0 / (float(input_dim) ** 0.5)
    weight = jax.random.uniform(k_w, (output_dim, input_dim),
                                minval=-bound, maxval=bound, dtype=jnp.float32)
    bias = jax.random.uniform(k_b, (output_dim,),
                              minval=-bound, maxval=bound, dtype=jnp.float32)
    # LayerNorm default init.
    ln_gamma = jnp.ones((output_dim,), jnp.float32)
    ln_beta = jnp.zeros((output_dim,), jnp.float32)

    # norm=True path
    out = linear_embedding(x, weight, bias, ln_gamma, ln_beta, use_norm=True)
    out = jax.block_until_ready(out)
    assert out.shape == (B, S, output_dim)
    ref = _reference(x, weight, bias, ln_gamma, ln_beta, True)
    err = float(jnp.max(jnp.abs(out - ref)))
    assert jnp.allclose(out, ref, rtol=3e-2, atol=3e-2), err  # bf16 stream tolerance

    # norm=False path
    out_nn = linear_embedding(x, weight, bias, ln_gamma, ln_beta, use_norm=False)
    out_nn = jax.block_until_ready(out_nn)
    assert out_nn.shape == (B, S, output_dim)
    ref_nn = _reference(x, weight, bias, ln_gamma, ln_beta, False)
    err_nn = float(jnp.max(jnp.abs(out_nn - ref_nn)))
    assert jnp.allclose(out_nn, ref_nn, rtol=3e-2, atol=3e-2), err_nn

    print("KERNEL_OK")
</pallas_src>

<mosaic_0001>
module attributes {stable_mosaic.version = 11 : i64} {
  func.func @_linear_embed_kernel(%arg0: i32, %arg1: memref<8x16xbf16, #tpu.memory_space<vmem>>, %arg2: memref<16x32xbf16, #tpu.memory_space<vmem>>, %arg3: memref<3x32xf32, #tpu.memory_space<vmem>>, %arg4: memref<8x32xf32, #tpu.memory_space<vmem>>) attributes {dimension_semantics = [#tpu.dimension_semantics<parallel>], iteration_bounds = array<i64: 2>, scalar_prefetch = 0 : i64, scratch_operands = 0 : i64, tpu.core_type = #tpu.core_type<tc>, window_params = [{transform_indices = @transform_0, window_bounds = array<i64: 8, 16>}, {pipeline_mode = #tpu.pipeline_mode<synchronous>, transform_indices = @transform_1, window_bounds = array<i64: 16, 32>}, {pipeline_mode = #tpu.pipeline_mode<synchronous>, transform_indices = @transform_2, window_bounds = array<i64: 3, 32>}, {transform_indices = @transform_3, window_bounds = array<i64: 8, 32>}]} {
    %c0 = arith.constant 0 : index
    %c0_0 = arith.constant 0 : index
    %0 = vector.load %arg1[%c0, %c0_0] : memref<8x16xbf16, #tpu.memory_space<vmem>>, vector<8x16xbf16>
    %c0_1 = arith.constant 0 : index
    %c0_2 = arith.constant 0 : index
    %1 = vector.load %arg2[%c0_1, %c0_2] : memref<16x32xbf16, #tpu.memory_space<vmem>>, vector<16x32xbf16>
    %cst = arith.constant dense<0.000000e+00> : vector<8x32xf32>
    %2 = tpu.matmul %0, %1, %cst {dimension_numbers = #tpu.dot_dimension_numbers<[1], [0], [0], [1], [0, 0, 1, 1], [], []>} : vector<8x16xbf16>, vector<16x32xbf16>, vector<8x32xf32> -> vector<8x32xf32>
    %c0_3 = arith.constant 0 : index
    %c0_4 = arith.constant 0 : index
    %3 = vector.load %arg3[%c0_3, %c0_4] : memref<3x32xf32, #tpu.memory_space<vmem>>, vector<1x32xf32>
    %4 = vector.broadcast %3 : vector<1x32xf32> to vector<8x32xf32>
    %5 = arith.addf %2, %4 : vector<8x32xf32>
    %cst_5 = arith.constant 5.000000e-01 : f32
    %6 = vector.broadcast %cst_5 : f32 to vector<8x32xf32>
    %7 = arith.mulf %6, %5 : vector<8x32xf32>
    %cst_6 = arith.constant 0.707106769 : f32
    %8 = vector.broadcast %cst_6 : f32 to vector<8x32xf32>
    %9 = arith.mulf %5, %8 : vector<8x32xf32>
    %10 = math.erf %9 : vector<8x32xf32>
    %cst_7 = arith.constant 1.000000e+00 : f32
    %11 = vector.broadcast %cst_7 : f32 to vector<8x32xf32>
    %12 = arith.addf %11, %10 : vector<8x32xf32>
    %13 = arith.mulf %7, %12 : vector<8x32xf32>
    %cst_8 = arith.constant dense<0.000000e+00> : vector<8xf32>
    %14 = vector.multi_reduction <add>, %13, %cst_8 [1] : vector<8x32xf32> to vector<8xf32>
    %15 = vector.shape_cast %14 : vector<8xf32> to vector<8x1xf32>
    %cst_9 = arith.constant 3.200000e+01 : f32
    %16 = vector.broadcast %cst_9 : f32 to vector<8x1xf32>
    %17 = arith.divf %15, %16 : vector<8x1xf32>
    %18 = vector.broadcast %17 : vector<8x1xf32> to vector<8x32xf32>
    %19 = arith.subf %13, %18 : vector<8x32xf32>
    %20 = arith.mulf %19, %19 : vector<8x32xf32>
    %cst_10 = arith.constant dense<0.000000e+00> : vector<8xf32>
    %21 = vector.multi_reduction <add>, %20, %cst_10 [1] : vector<8x32xf32> to vector<8xf32>
    %22 = vector.shape_cast %21 : vector<8xf32> to vector<8x1xf32>
    %cst_11 = arith.constant 3.200000e+01 : f32
    %23 = vector.broadcast %cst_11 : f32 to vector<8x1xf32>
    %24 = arith.divf %22, %23 : vector<8x1xf32>
    %cst_12 = arith.constant 9.99999974E-6 : f32
    %25 = vector.broadcast %cst_12 : f32 to vector<8x1xf32>
    %26 = arith.addf %24, %25 : vector<8x1xf32>
    %27 = math.rsqrt %26 : vector<8x1xf32>
    %28 = vector.broadcast %27 : vector<8x1xf32> to vector<8x32xf32>
    %29 = arith.mulf %19, %28 : vector<8x32xf32>
    %c1 = arith.constant 1 : index
    %c0_13 = arith.constant 0 : index
    %30 = vector.load %arg3[%c1, %c0_13] : memref<3x32xf32, #tpu.memory_space<vmem>>, vector<1x32xf32>
    %31 = vector.broadcast %30 : vector<1x32xf32> to vector<8x32xf32>
    %32 = arith.mulf %29, %31 : vector<8x32xf32>
    %c2 = arith.constant 2 : index
    %c0_14 = arith.constant 0 : index
    %33 = vector.load %arg3[%c2, %c0_14] : memref<3x32xf32, #tpu.memory_space<vmem>>, vector<1x32xf32>
    %34 = vector.broadcast %33 : vector<1x32xf32> to vector<8x32xf32>
    %35 = arith.addf %32, %34 : vector<8x32xf32>
    %c0_15 = arith.constant 0 : index
    %c0_16 = arith.constant 0 : index
    %36 = vector.load %arg4[%c0_15, %c0_16] : memref<8x32xf32, #tpu.memory_space<vmem>>, vector<8x32xf32>
    tpu.vector_store %arg4[%c0_15, %c0_16], %35 {strides = array<i32>} : memref<8x32xf32, #tpu.memory_space<vmem>>, vector<8x32xf32>,
    return
  }
  func.func @transform_0(%arg0: i32) -> (i32, i32) {
    %c0_i32 = arith.constant 0 : i32
    %c0_i32_0 = arith.constant 0 : i32
    return %arg0, %c0_i32 : i32, i32
  }
  func.func @transform_1(%arg0: i32) -> (i32, i32) {
    %c0_i32 = arith.constant 0 : i32
    %c0_i32_0 = arith.constant 0 : i32
    %c0_i32_1 = arith.constant 0 : i32
    return %c0_i32, %c0_i32_0 : i32, i32
  }
  func.func @transform_2(%arg0: i32) -> (i32, i32) {
    %c0_i32 = arith.constant 0 : i32
    %c0_i32_0 = arith.constant 0 : i32
    %c0_i32_1 = arith.constant 0 : i32
    return %c0_i32, %c0_i32_0 : i32, i32
  }
  func.func @transform_3(%arg0: i32) -> (i32, i32) {
    %c0_i32 = arith.constant 0 : i32
    %c0_i32_0 = arith.constant 0 : i32
    return %arg0, %c0_i32 : i32, i32
  }
}

</mosaic_0001>

<llo_original>
// kernel: linear_embedding.1
$region0: #{linear_embedding.1}
  #allocation0 [shape = 'u32[]', space=smem, size = 0x4, offset = 0x4, fixed_abs, tag = 'smem constant byte address 0x4 - core index']
  #allocation1 [shape = 'u32[144,128]{1,0:T(1,128)}', space=vmem, size = 0x12000, scoped, tag = 'internal scratch']
  %s0 = inlined_call_operand.vmem [shape: bf16[16,16], index: 0, kind: input, shape index: {}]
  %s1 = inlined_call_operand.vmem [shape: bf16[16,32], index: 1, kind: input, shape index: {}]
  %s2 = inlined_call_operand.vmem [shape: f32[3,32], index: 2, kind: input, shape index: {}]
  %s3 = inlined_call_operand.hbm [shape: f32[16,32], index: 3, kind: output, shape index: {}]
  %s4 = sld [smem:[#allocation0]]
  $region45: #{linear_embedding.1} parent=0
    _
  %s6 = ssub.s32 1, %s4
  %s7 = scalar_select 0, %s6, %s4
  $region1: #{linear_embedding.1} parent=0
    #allocation2 [shape = 'u8[8192]{0}', space=vmem, size = 0x2000, scoped, tag = 'output window, operand 0']
    #allocation3 [shape = 's32[2]{0}', space=sflag, size = 0x8, scoped, tag = 'scoped memory for linear_embedding.1']
    %8 = vsyncpa [#allocation3], 0
    %s9 = scalar_lea.sflag [#allocation3], 1
    %10 = vsyncpa %s9, 0
    loop: start=0, step=1, limit=4
    $region2: #{linear_embedding.1} parent=1 // loop_pre_header
      _
    $region3: #{linear_embedding.1} parent=1 // loop_header
      %s12 = sphi 0, %s16
      %p13 = scmp.ge.s32.totalorder %s12, 4
      %s22 = sphi 0, %s24
      %s25 = sphi 0, %s22
      %s26 = sphi 0, %s25
      %s42 = sphi 0, %s26
      %s46 = sphi 0, %s46
      %s48 = sphi 0, %s46
      %s49 = sphi 0, %s48
      %s63 = sphi 0, %s49
      %s67 = sphi 0, %s67
      %s69 = sphi 0, %s67
      %s70 = sphi 0, %s69
      %s84 = sphi 0, %s70
      %s90 = sphi 0, %s92
      %s93 = sphi 0, %s90
      %s94 = sphi 0, %s93
      %s110 = sphi 0, %s94
    $region4: #{linear_embedding.1} parent=1 // loop_header_branch
      %15 = sbr.rel (%p13) target = $region8
    $region5: #{linear_embedding.1} parent=1 // loop_body
      %s17 = ssub.s32 %s12, 1
      %s18 = ssub.s32 %s12, 2
      %s19 = sadd.s32 %s12, 1
      %s20 = ssub.s32 %s12, %s19
      %p21 = scmp.eq.s32.totalorder %s20, 0
      %s23 = sadd.s32 %s22, 1
      %s24 = scalar_select %p21, %s22, %s23
      %p27 = pneg %p21
      %p28 = scmp.eq.s32.totalorder %s12, 1
      %p29 = por %p27, %p28
      %p30 = scmp.ne.s32.totalorder %s22, %s25
      %p31 = scmp.eq.s32.totalorder %s12, 0
      %p32 = por %p30, %p31
      %p33 = scmp.ne.s32.totalorder %s22, %s25
      %p34 = scmp.eq.s32.totalorder %s17, 1
      %p35 = por %p33, %p34
      %p36 = scmp.ne.s32.totalorder %s25, %s26
      %p37 = scmp.eq.s32.totalorder %s17, 0
      %p38 = por %p36, %p37
      %p39 = scmp.ne.s32.totalorder %s25, %s26
      %p40 = scmp.eq.s32.totalorder %s18, 1
      %p41 = por %p39, %p40
      %p43 = scmp.ne.s32.totalorder %s26, %s42
      %p44 = scmp.eq.s32.totalorder %s18, 0
      %p45 = por %p43, %p44
      %s47 = sadd.s32 %s46, 1
      %p50 = scmp.eq.s32.totalorder %s12, 1
      %p51 = scmp.ne.s32.totalorder %s46, %s48
      %p52 = scmp.eq.s32.totalorder %s12, 0
      %p53 = por %p51, %p52
      %p54 = scmp.ne.s32.totalorder %s46, %s48
      %p55 = scmp.eq.s32.totalorder %s17, 1
      %p56 = por %p54, %p55
      %p57 = scmp.ne.s32.totalorder %s48, %s49
      %p58 = scmp.eq.s32.totalorder %s17, 0
      %p59 = por %p57, %p58
      %p60 = scmp.ne.s32.totalorder %s48, %s49
      %p61 = scmp.eq.s32.totalorder %s18, 1
      %p62 = por %p60, %p61
      %p64 = scmp.ne.s32.totalorder %s49, %s63
      %p65 = scmp.eq.s32.totalorder %s18, 0
      %p66 = por %p64, %p65
      %s68 = sadd.s32 %s67, 1
      %p71 = scmp.eq.s32.totalorder %s12, 1
      %p72 = scmp.ne.s32.totalorder %s67, %s69
      %p73 = scmp.eq.s32.totalorder %s12, 0
      %p74 = por %p72, %p73
      %p75 = scmp.ne.s32.totalorder %s67, %s69
      %p76 = scmp.eq.s32.totalorder %s17, 1
      %p77 = por %p75, %p76
      %p78 = scmp.ne.s32.totalorder %s69, %s70
      %p79 = scmp.eq.s32.totalorder %s17, 0
      %p80 = por %p78, %p79
      %p81 = scmp.ne.s32.totalorder %s69, %s70
      %p82 = scmp.eq.s32.totalorder %s18, 1
      %p83 = por %p81, %p82
      %p85 = scmp.ne.s32.totalorder %s70, %s84
      %p86 = scmp.eq.s32.totalorder %s18, 0
      %p87 = por %p85, %p86
      %s88 = ssub.s32 %s12, %s19
      %p89 = scmp.eq.s32.totalorder %s88, 0
      %s91 = sadd.s32 %s90, 1
      %s92 = scalar_select %p89, %s90, %s91
      %p95 = pneg %p89
      %p96 = scmp.eq.s32.totalorder %s12, 1
      %p97 = por %p95, %p96
      %p98 = scmp.ne.s32.totalorder %s90, %s93
      %p99 = scmp.eq.s32.totalorder %s12, 0
      %p100 = por %p98, %p99
      %p101 = scmp.ne.s32.totalorder %s90, %s93
      %p102 = scmp.eq.s32.totalorder %s17, 1
      %p103 = por %p101, %p102
      %p104 = scmp.ne.s32.totalorder %s93, %s94
      %p105 = scmp.eq.s32.totalorder %s17, 0
      %p106 = por %p104, %p105
      %p107 = scmp.ne.s32.totalorder %s93, %s94
      %p108 = scmp.eq.s32.totalorder %s18, 1
      %p109 = por %p107, %p108
      %p111 = scmp.ne.s32.totalorder %s94, %s110
      %p112 = scmp.eq.s32.totalorder %s18, 0
      %p113 = por %p111, %p112
      %p114 = scmp.le.s32.totalorder 1, %s12
      %p115 = scmp.lt.s32.totalorder %s12, 3
      %p116 = pnand %p114, %p115
      %p117 = pneg %p116
      // Predicated region
      $region9: #{linear_embedding.1} parent=5 // pred_check
        _
      $region10: #{linear_embedding.1} parent=5 // pred_check_branch
        %119 = sbr.rel (%p116) target = $region12
      $region11: #{linear_embedding.1} parent=5 // pred_region
        %s120 = ssub.s32 %s12, 1
        // Predicated region
        $region13: #{linear_embedding.1} parent=11 // pred_check
          %p121 = pneg %p59
        $region14: #{linear_embedding.1} parent=11 // pred_check_branch
          %123 = sbr.rel (%p121) target = $region16
        $region15: #{linear_embedding.1} parent=11 // pred_region
          _
        $region16: #{linear_embedding.1} parent=11 // pred_fallthru
          _
        // Predicated region
        $region17: #{linear_embedding.1} parent=11 // pred_check
          %p124 = pneg %p80
        $region18: #{linear_embedding.1} parent=11 // pred_check_branch
          %126 = sbr.rel (%p124) target = $region20
        $region19: #{linear_embedding.1} parent=11 // pred_region
          _
        $region20: #{linear_embedding.1} parent=11 // pred_fallthru
          _
      $region12: #{linear_embedding.1} parent=5 // pred_fallthru
        _
      %p127 = scmp.lt.s32.totalorder %s12, 2
      // Predicated region
      $region21: #{linear_embedding.1} parent=5 // pred_check
        %p128 = pneg %p127
      $region22: #{linear_embedding.1} parent=5 // pred_check_branch
        %130 = sbr.rel (%p128) target = $region24
      $region23: #{linear_embedding.1} parent=5 // pred_region
        // Predicated region
        $region25: #{linear_embedding.1} parent=23 // pred_check
          %p131 = pneg %p32
        $region26: #{linear_embedding.1} parent=23 // pred_check_branch
          %133 = sbr.rel (%p131) target = $region28
        $region27: #{linear_embedding.1} parent=23 // pred_region
          %p134 = scmp.lt.s32.totalorder %s12, 1
          %s135 = scalar_select %p134, %s12, 1
          %s136 = smul.addr %s135, 4
          %s137 = scalar_lea.vmem %s0, %s136
        $region28: #{linear_embedding.1} parent=23 // pred_fallthru
          _
      $region24: #{linear_embedding.1} parent=5 // pred_fallthru
        _
      %p138 = scmp.le.s32.totalorder 1, %s12
      %p139 = scmp.lt.s32.totalorder %s12, 3
      %p140 = pnand %p138, %p139
      %p141 = pneg %p140
      // Predicated region
      $region29: #{linear_embedding.1} parent=5 // pred_check
        _
      $region30: #{linear_embedding.1} parent=5 // pred_check_branch
        %143 = sbr.rel (%p140) target = $region32
      $region31: #{linear_embedding.1} parent=5 // pred_region
        %s144 = ssub.s32 %s12, 1
        %p145 = scmp.lt.s32.totalorder %s17, 1
        %s146 = scalar_select %p145, %s17, 1
        %s147 = smul.addr %s146, 4
        %s148 = scalar_lea.vmem %s0, %s147
        %p149 = pneg %p38
        %p150 = pneg %p35
        %p151 = pneg %p59
        %p152 = pneg %p56
        %p153 = pneg %p80
        %p154 = pneg %p77
        %p155 = pneg %p106
        %p156 = pneg %p103
        %s157 = sand.u32 %s93, 1
        %s158 = scalar_lea.sflag [#allocation3], %s157
        %s159 = sand.u32 %s93, 1
        %s160 = smul.addr %s159, 8
        %s161 = scalar_lea.vmem [#allocation2], %s160
        %p162 = scmp.lt.s32.totalorder %s17, 1
        %s163 = scalar_select %p162, %s17, 1
        %s164 = smul.addr %s163, 4
        %s165 = scalar_lea.vmem %s0, %s164
        %v167 = vld [vmem:[%s165] sm:$0xf]
        %v168 = vld [vmem:[%s1] sm:$0xf]
        %v169 = vld [vmem:[%s1 + $0x4] sm:$0xf]
        %v170 = vld [vmem:[%s2] sm:$0x1]
        %v171 = vlaneseq
        %v172 = vshrl.u32 %v171, 7
        %v173 = vsub.s32 0, %v172
        %v174 = vrot.slane %v170, %v173
        %v177 = vunpack.c.l.b16 %v168
        %v178 = vunpack.c.l.b16 %v169
        %v179 = vpack.c.b16 %v178, %v177
        %vm181 = vcmask 130048
        %v183 = vsel %vm181, %v167, 0
        %185 = vmatprep.subr.bf16.mxu0 0
        %186 = vmatpush1.bf16.msra.mxu0 0
        %187 = vmatprep.subr.bf16.mxu0 0
        %188 = vmatpush1.bf16.msra.mxu0 0
        %189 = vmatprep.subr.bf16.mxu0 0
        %190 = vmatpush1.bf16.msra.mxu0 0
        %191 = vmatprep.subr.bf16.mxu0 0
        %192 = vmatpush1.bf16.msra.mxu0 0
        %193 = vmatprep.subr.bf16.mxu0 0
        %194 = vmatpush1.bf16.msra.mxu0 0
        %195 = vmatprep.subr.bf16.mxu0 0
        %196 = vmatpush1.bf16.msra.mxu0 0
        %197 = vmatprep.subr.bf16.mxu0 0
        %198 = vmatpush1.bf16.msra.mxu0 0
        %199 = vmatprep.subr.bf16.mxu0 0
        %200 = vmatpush1.bf16.msra.mxu0 %v179
        %201 = vmatprep.subr.bf16.mxu0 0
        %202 = vmatpush2.bf16.msra.mxu0 0
        %203 = vmatprep.subr.bf16.mxu0 0
        %204 = vmatpush2.bf16.msra.mxu0 0
        %205 = vmatprep.subr.bf16.mxu0 0
        %206 = vmatpush2.bf16.msra.mxu0 0
        %207 = vmatprep.subr.bf16.mxu0 0
        %208 = vmatpush2.bf16.msra.mxu0 0
        %209 = vmatprep.subr.bf16.mxu0 0
        %210 = vmatpush2.bf16.msra.mxu0 0
        %211 = vmatprep.subr.bf16.mxu0 0
        %212 = vmatpush2.bf16.msra.mxu0 0
        %213 = vmatprep.subr.bf16.mxu0 0
        %214 = vmatpush2.bf16.msra.mxu0 0
        %215 = vmatprep.subr.bf16.mxu0 0
        %216 = vmatpush2.bf16.msra.mxu0 0
        %217 = vmatprep.mubr.bf16.mxu0 0
        %218 = vmatmul.mubr.bf16.gmra.mxu0 %v183
        %v219 = vpop.f32.mrf.mxu0
        %v220 = vadd.f32 %v174, %v219
        %v221 = vpop.f32.mrf.mxu0
        %v222 = vpop.f32.mrf.mxu0
        %v223 = vpop.f32.mrf.mxu0
        %224 = vdwg.mxu0
        %v225 = vmul.f32 %v220, 0.5
        %v226 = vmul.f32 %v220, 0.70710677
        %v227 = verf.f32.pop %v226
        %v228 = vadd.f32 %v227, 1.0
        %v229 = vmul.f32 %v225, %v228
        %vm230 = vcmask 261120
        %v231 = vsel %vm230, %v229, 0.0
        %232 = vadd.xlane.f32.xlu0 %v231
        %v233 = vpop.xlane.xlu0 %232
        %v234 = vrcp.pop 32.0
        %v235 = vmul.f32 %v233, %v234
        %v236 = vsub.f32 %v229, %v235
        %v237 = vmul.f32 %v236, %v236
        %v238 = vsel %vm230, %v237, 0.0
        %239 = vadd.xlane.f32.xlu0 %v238
        %v240 = vpop.xlane.xlu0 %239
        %v241 = vmul.f32 %v240, %v234
        %v242 = vadd.f32 %v241, 1e-05
        %v243 = vrsqrt.pop %v242
        %v244 = vmul.f32 %v236, %v243
        %v245 = vld [vmem:[%s2 + $0x1] sm:$0x1]
        %v246 = vlaneseq
        %v247 = vshrl.u32 %v246, 7
        %v248 = vsub.s32 0, %v247
        %v249 = vrot.slane %v245, %v248
        %v250 = vmul.f32 %v244, %v249
        %v251 = vld [vmem:[%s2 + $0x2] sm:$0x1]
        %v252 = vlaneseq
        %v253 = vshrl.u32 %v252, 7
        %v254 = vsub.s32 0, %v253
        %v255 = vrot.slane %v251, %v254
        %v256 = vadd.f32 %v250, %v255
        %257 = vst.msk [vmem:[%s161] sm:$0xff] %vm230, %v256
        %s258 = sand.u32 %s93, 1
        %s259 = scalar_lea.sflag [#allocation3], %s258
        %s260 = sand.u32 %s93, 1
        %s261 = smul.addr %s260, 8
        %s262 = scalar_lea.vmem [#allocation2], %s261
        // Predicated region
        $region33: #{linear_embedding.1} parent=31 // pred_check
          %p263 = pneg %p103
        $region34: #{linear_embedding.1} parent=31 // pred_check_branch
          %265 = sbr.rel (%p263) target = $region36
        $region35: #{linear_embedding.1} parent=31 // pred_region
          %s267 = ssub.s32 128, 128
          %268 = vsyncadd %s259, %s267
          %s269 = smul.addr %s17, 128
          %s270 = scalar_lea.hbm %s3, %s269
          %s272 = sshll.u32 %s262, 4
          %s273 = int_to_ptr.vmem [resolvable:$true] %s272
          %275 = dma.vmem_to_hbm [thread:$0]  %s273, 128, %s270, %s259
        $region36: #{linear_embedding.1} parent=31 // pred_fallthru
          _
      $region32: #{linear_embedding.1} parent=5 // pred_fallthru
        _
      %p276 = scmp.le.s32.totalorder 2, %s12
      // Predicated region
      $region37: #{linear_embedding.1} parent=5 // pred_check
        %p277 = pneg %p276
      $region38: #{linear_embedding.1} parent=5 // pred_check_branch
        %279 = sbr.rel (%p277) target = $region40
      $region39: #{linear_embedding.1} parent=5 // pred_region
        %s280 = ssub.s32 %s12, 2
        // Predicated region
        $region41: #{linear_embedding.1} parent=39 // pred_check
          %p281 = pneg %p109
        $region42: #{linear_embedding.1} parent=39 // pred_check_branch
          %283 = sbr.rel (%p281) target = $region44
        $region43: #{linear_embedding.1} parent=39 // pred_region
          %s284 = sand.u32 %s94, 1
          %s285 = scalar_lea.sflag [#allocation3], %s284
          %s286 = sand.u32 %s94, 1
          %s287 = smul.addr %s286, 8
          %s288 = scalar_lea.vmem [#allocation2], %s287
          %289 = dma.done %s285, 128
        $region44: #{linear_embedding.1} parent=39 // pred_fallthru
          _
      $region40: #{linear_embedding.1} parent=5 // pred_fallthru
        _
    $region6: #{linear_embedding.1} parent=1 // loop_footer
      %s16 = sadd.s32 1, %s12
    $region7: #{linear_embedding.1} parent=1 // loop_footer_branch
      %11 = sbr.rel target = $region3
    $region8: #{linear_embedding.1} parent=1 // loop_exit
      _
    %290 = vsyncpa [#allocation3], 1
    %s291 = scalar_lea.sflag [#allocation3], 1
    %292 = vsyncpa %s291, 1

</llo_original>
